<compile_context>
chip_gen: v7x
topology: tpu7x:2x2x1
jax: 0.10.0
libtpu: 0.0.40
codegen_flags: <defaults>
</compile_context>

<pallas_src>
import functools
import math

import jax
import jax.numpy as jnp
from jax.experimental import pallas as pl
from jax.experimental.pallas import tpu as pltpu

_SQRT_2_INV = 1.0 / math.sqrt(2.0)
_TANH_C0 = math.sqrt(2.0 / math.pi)


# ----------------------------------------------------------------------------- kernels
def _geglu_partial(x_ref, w1h_ref, w1g_ref, b1h_ref, b1g_ref, w2_ref, tanh_gelu):
    """(tm, ti) slice of GEGLU(x) and its partial product with the W2[k] tile."""
    x = x_ref[...]  # native dtype; MXU accumulates in f32 via preferred_element_type
    h = jnp.dot(x, w1h_ref[...], preferred_element_type=jnp.float32)
    h = h + b1h_ref[...].astype(jnp.float32)
    g = jnp.dot(x, w1g_ref[...], preferred_element_type=jnp.float32)
    g = g + b1g_ref[...].astype(jnp.float32)
    if tanh_gelu:
        # tanh approximation: offloads work to the EUP slot; numerics differ slightly.
        gelu_g = 0.5 * g * (1.0 + jnp.tanh(_TANH_C0 * (g + 0.044715 * g * g * g)))
    else:
        # Exact erf GELU (torch.nn.functional.gelu default), computed in f32.
        gelu_g = 0.5 * g * (1.0 + jax.lax.erf(g * _SQRT_2_INV))
    act = h * gelu_g
    # Dropout(p=0.0) is the identity.
    return jnp.dot(act.astype(w2_ref.dtype), w2_ref[...],
                   preferred_element_type=jnp.float32)


def _ffn_kernel_resident(x_ref, w1h_ref, w1g_ref, b1h_ref, b1g_ref,
                         w2_ref, b2_ref, o_ref, *, tanh_gelu):
    """Single reduction step (ti == inner): weights VMEM-resident, no acc scratch."""
    partial = _geglu_partial(x_ref, w1h_ref, w1g_ref, b1h_ref, b1g_ref, w2_ref,
                             tanh_gelu)
    o_ref[...] = (partial + b2_ref[...].astype(jnp.float32)).astype(o_ref.dtype)


def _ffn_kernel_reduce(x_ref, w1h_ref, w1g_ref, b1h_ref, b1g_ref,
                       w2_ref, b2_ref, o_ref, acc_ref, *, tanh_gelu):
    """Inner axis tiled: accumulate partial act @ W2 products in f32 VMEM scratch."""
    k = pl.program_id(2)

    @pl.when(k == 0)
    def _():
        acc_ref[...] = jnp.zeros_like(acc_ref)

    acc_ref[...] += _geglu_partial(x_ref, w1h_ref, w1g_ref, b1h_ref, b1g_ref,
                                   w2_ref, tanh_gelu)

    @pl.when(k == pl.num_programs(2) - 1)
    def _():
        o_ref[...] = (acc_ref[...] + b2_ref[...].astype(jnp.float32)).astype(o_ref.dtype)


# ----------------------------------------------------------------------------- tiling
def _cdiv(a, b):
    return -(-a // b)


def _round_up(a, b):
    return _cdiv(a, b) * b


def _vmem_limit_bytes():
    """Chip-aware scoped-VMEM budget; never the full physical VMEM (v7x!)."""
    mib = 1024 * 1024
    phys = 64 * mib  # conservative (v7x-sized) fallback
    try:
        phys = int(pltpu.get_tpu_info().vmem_capacity_bytes)
    except Exception:
        pass
    if phys >= 128 * mib:
        return 112 * mib                       # v5e / v6e: 128 MiB physical
    return min(phys * 3 // 4, 48 * mib)        # v7x: 64 MiB physical -> 48 MiB cap


def _select_tiles(M, dim, inner, dim_out, itemsize, tile_budget):
    """Pick (tm, ti, tn) minimizing estimated HBM traffic under the VMEM budget."""
    # Sublane packing for the token-tile fallback (8 f32 / 16 bf16 / 32 int8-fp8).
    sub = 8 if itemsize >= 4 else (16 if itemsize == 2 else 32)

    if M <= 2 * sub:
        tm_cands = [_round_up(M, sub)]
    elif M < 256:
        # Small M: aim for >= 2 token tiles so both v7x TensorCores get work.
        tm_cands = [_round_up(_cdiv(M, 2), sub)]
    else:
        tm_cands = [c for c in (1024, 512, 256, 128) if c <= M] or [128]

    def dim_cands(full):
        cands = [full]
        for c in (2048, 1024, 512, 256, 128):
            if c < full and full % c == 0:
                cands.append(c)
        return cands

    ti_cands = dim_cands(inner)
    tn_cands = dim_cands(dim_out)

    def footprint(tm, ti, tn):
        f = 2 * tm * dim * itemsize            # x tile (double-buffered)
        f += 2 * 2 * dim * ti * itemsize       # W1 hidden + gate halves
        f += 2 * 2 * ti * itemsize             # b1 halves
        f += 2 * ti * tn * itemsize            # W2 tile
        f += 2 * tn * itemsize                 # b2
        f += 2 * tm * tn * itemsize            # output tile
        f += tm * tn * 4                       # f32 accumulator scratch
        f += 4 * tm * ti * 4                   # h / g / gelu / act f32 intermediates
        return f

    w1_bytes = 2 * dim * inner * itemsize
    w2_bytes = inner * dim_out * itemsize

    def hbm_score(tm, ti, tn):
        ni, nj, nk = _cdiv(M, tm), dim_out // tn, inner // ti
        t = ni * tm * dim * itemsize                                     # x reads
        t += w1_bytes * (1 if (nk == 1 or ni * nj == 1) else ni * nj)    # W1 stream
        t += w2_bytes * (1 if (nj * nk == 1 or ni == 1) else ni)         # W2 stream
        t += ni * tm * dim_out * itemsize                                # out writes
        t += (nj - 1) * ni * w1_bytes              # h/g recompute penalty if dim_out tiled
        t += ni * nj * nk * 450_000                # ~0.35 us fixed cost per grid step
        return t

    best, best_score = None, None
    for tm in tm_cands:
        for ti in ti_cands:
            for tn in tn_cands:
                if footprint(tm, ti, tn) > tile_budget:
                    continue
                s = hbm_score(tm, ti, tn)
                if best is None or s < best_score:
                    best, best_score = (tm, ti, tn), s
    if best is None:
        # Nothing fits the budget estimate: fall back to the smallest tiles.
        best = (tm_cands[-1], ti_cands[-1], tn_cands[-1])
    return best


# ----------------------------------------------------------------------------- wrapper
def feed_forward_geglu(x, w1, b1, w2, b2, *, tm=None, ti=None, tn=None,
                       compute_dtype=None, tanh_gelu=False):
    """FeedForward(dim, activation_fn='geglu') forward: [B, S, dim] -> [B, S, dim_out].

    compute_dtype: optionally cast x / weights (e.g. jnp.bfloat16) for bf16 MXU
    throughput + half the weight DMA. tanh_gelu: use the tanh GELU approximation.
    Both are numerics-affecting and default OFF (exact erf GELU, native dtypes).
    """
    orig_dtype = x.dtype
    B, S, dim = x.shape
    inner = w1.shape[1] // 2
    dim_out = w2.shape[1]

    # GEGLU halves are split in the wrapper (layout plumbing, not compute) so the
    # kernel issues two lane-aligned MXU matmuls instead of slicing a 2*inner slab.
    w1_h, w1_g = w1[:, :inner], w1[:, inner:]
    b1_h = b1[:inner].reshape(1, inner)
    b1_g = b1[inner:].reshape(1, inner)
    b2_2d = b2.reshape(1, dim_out)

    M = B * S
    # No padded copy of the token slab: grid uses cdiv(M, tm) and the ragged last
    # block is handled by the pipeline.  Safe because every output row depends only
    # on its own input row, so the out-of-range rows (garbage) are never written.
    x2d = x.reshape(M, dim)

    if compute_dtype is not None:
        x2d = x2d.astype(compute_dtype)
        w1_h = w1_h.astype(compute_dtype)
        w1_g = w1_g.astype(compute_dtype)
        w2 = w2.astype(compute_dtype)

    itemsize = jnp.dtype(x2d.dtype).itemsize
    vmem_limit = _vmem_limit_bytes()
    auto_tm, auto_ti, auto_tn = _select_tiles(
        M, dim, inner, dim_out, itemsize,
        tile_budget=vmem_limit - 4 * 1024 * 1024)   # headroom for compiler scratch
    tm = auto_tm if tm is None else tm
    ti = auto_ti if ti is None else ti
    tn = auto_tn if tn is None else tn
    assert inner % ti == 0, "inner tile must divide the hidden dimension"
    assert dim_out % tn == 0, "output tile must divide dim_out"

    ni, nj, nk = _cdiv(M, tm), dim_out // tn, inner // ti
    grid = (ni, nj, nk)

    in_specs = [
        pl.BlockSpec((tm, dim), lambda i, j, k: (i, 0)),       # x tile (held across j, k)
        pl.BlockSpec((dim, ti), lambda i, j, k: (0, k)),       # W1 hidden half
        pl.BlockSpec((dim, ti), lambda i, j, k: (0, k)),       # W1 gate half
        pl.BlockSpec((1, ti), lambda i, j, k: (0, k)),         # b1 hidden half
        pl.BlockSpec((1, ti), lambda i, j, k: (0, k)),         # b1 gate half
        pl.BlockSpec((ti, tn), lambda i, j, k: (k, j)),        # W2 tile
        pl.BlockSpec((1, tn), lambda i, j, k: (0, j)),         # b2 tile
    ]
    out_spec = pl.BlockSpec((tm, tn), lambda i, j, k: (i, j))

    if nk == 1:
        # Weights fully resident across token tiles: no accumulator round trip.
        kernel = functools.partial(_ffn_kernel_resident, tanh_gelu=tanh_gelu)
        scratch = []
    else:
        kernel = functools.partial(_ffn_kernel_reduce, tanh_gelu=tanh_gelu)
        scratch = [pltpu.VMEM((tm, tn), jnp.float32)]

    out2d = pl.pallas_call(
        kernel,
        out_shape=jax.ShapeDtypeStruct((M, dim_out), orig_dtype),
        grid_spec=pltpu.PrefetchScalarGridSpec(
            num_scalar_prefetch=0,
            grid=grid,
            in_specs=in_specs,
            out_specs=out_spec,
            scratch_shapes=scratch,
        ),
        compiler_params=pltpu.CompilerParams(
            dimension_semantics=("parallel", "parallel", "arbitrary"),
            vmem_limit_bytes=vmem_limit,
        ),
    )(x2d, w1_h, w1_g, b1_h, b1_g, w2, b2_2d)

    return out2d.reshape(B, S, dim_out)


# ----------------------------------------------------------------------------- reference & test
def _reference(x, w1, b1, w2, b2):
    """Pure-JAX reference of the same FeedForward forward pass."""
    h = x @ w1 + b1
    inner = h.shape[-1] // 2
    hidden, gate = h[..., :inner], h[..., inner:]
    gelu_gate = 0.5 * gate * (1.0 + jax.lax.erf(gate / jnp.sqrt(2.0)))
    return (hidden * gelu_gate) @ w2 + b2


def _make_params(key, dim, mult, dim_out):
    inner = dim * mult
    k1, kb1, k2, kb2 = jax.random.split(key, 4)
    bound1 = 1.0 / math.sqrt(dim)
    w1 = jax.random.uniform(k1, (dim, 2 * inner), minval=-bound1, maxval=bound1,
                            dtype=jnp.float32)
    b1 = jax.random.uniform(kb1, (2 * inner,), minval=-bound1, maxval=bound1,
                            dtype=jnp.float32)
    bound2 = 1.0 / math.sqrt(inner)
    w2 = jax.random.uniform(k2, (inner, dim_out), minval=-bound2, maxval=bound2,
                            dtype=jnp.float32)
    b2 = jax.random.uniform(kb2, (dim_out,), minval=-bound2, maxval=bound2,
                            dtype=jnp.float32)
    return w1, b1, w2, b2


if __name__ == "__main__":
    key = jax.random.PRNGKey(0)

    # Test 1: FeedForward(dim=32, mult=4, activation_fn='geglu') on [2, 8, 32].
    kx, kp, key = jax.random.split(key, 3)
    B, S, dim, mult = 2, 8, 32, 4
    x = jax.random.normal(kx, (B, S, dim), dtype=jnp.float32)
    w1, b1, w2, b2 = _make_params(kp, dim, mult, dim)
    out = jax.block_until_ready(feed_forward_geglu(x, w1, b1, w2, b2))
    ref = _reference(x, w1, b1, w2, b2)
    assert out.shape == ref.shape
    assert jnp.allclose(out, ref, atol=1e-5, rtol=1e-5), "test1 mismatch vs reference"

    # Test 2: ragged token count (M=40 not a multiple of the token tile) with
    # FeedForward(dim=64, mult=4), exercising the no-pad / masked-tail path.
    kx, kp, key = jax.random.split(key, 3)
    B, S, dim, mult = 1, 40, 64, 4
    x = jax.random.normal(kx, (B, S, dim), dtype=jnp.float32)
    w1, b1, w2, b2 = _make_params(kp, dim, mult, dim)
    out = jax.block_until_ready(feed_forward_geglu(x, w1, b1, w2, b2))
    ref = _reference(x, w1, b1, w2, b2)
    assert out.shape == ref.shape
    assert jnp.allclose(out, ref, atol=1e-5, rtol=1e-5), "test2 mismatch vs reference"

    # Test 3: force the tiled-inner-axis (f32 accumulator) kernel path.
    out = jax.block_until_ready(feed_forward_geglu(x, w1, b1, w2, b2, ti=128))
    assert jnp.allclose(out, ref, atol=1e-5, rtol=1e-5), "test3 mismatch vs reference"

    print("KERNEL_OK")
</pallas_src>

<mosaic_0001>
module attributes {stable_mosaic.version = 11 : i64} {
  func.func @_ffn_kernel_resident(%arg0: i32, %arg1: i32, %arg2: i32, %arg3: memref<16x32xf32, #tpu.memory_space<vmem>>, %arg4: memref<32x128xf32, #tpu.memory_space<vmem>>, %arg5: memref<32x128xf32, #tpu.memory_space<vmem>>, %arg6: memref<1x128xf32, #tpu.memory_space<vmem>>, %arg7: memref<1x128xf32, #tpu.memory_space<vmem>>, %arg8: memref<128x32xf32, #tpu.memory_space<vmem>>, %arg9: memref<1x32xf32, #tpu.memory_space<vmem>>, %arg10: memref<16x32xf32, #tpu.memory_space<vmem>>) attributes {dimension_semantics = [#tpu.dimension_semantics<parallel>, #tpu.dimension_semantics<parallel>, #tpu.dimension_semantics<arbitrary>], iteration_bounds = array<i64: 1, 1, 1>, scalar_prefetch = 0 : i64, scratch_operands = 0 : i64, tpu.core_type = #tpu.core_type<tc>, window_params = [{transform_indices = @transform_0, window_bounds = array<i64: 16, 32>}, {transform_indices = @transform_1, window_bounds = array<i64: 32, 128>}, {transform_indices = @transform_2, window_bounds = array<i64: 32, 128>}, {transform_indices = @transform_3, window_bounds = array<i64: 1, 128>}, {transform_indices = @transform_4, window_bounds = array<i64: 1, 128>}, {transform_indices = @transform_5, window_bounds = array<i64: 128, 32>}, {transform_indices = @transform_6, window_bounds = array<i64: 1, 32>}, {transform_indices = @transform_7, window_bounds = array<i64: 16, 32>}]} {
    %c0 = arith.constant 0 : index
    %c0_0 = arith.constant 0 : index
    %0 = vector.load %arg3[%c0, %c0_0] : memref<16x32xf32, #tpu.memory_space<vmem>>, vector<16x32xf32>
    %c0_1 = arith.constant 0 : index
    %c0_2 = arith.constant 0 : index
    %1 = vector.load %arg4[%c0_1, %c0_2] : memref<32x128xf32, #tpu.memory_space<vmem>>, vector<32x128xf32>
    %cst = arith.constant dense<0.000000e+00> : vector<16x128xf32>
    %2 = tpu.matmul %0, %1, %cst {dimension_numbers = #tpu.dot_dimension_numbers<[1], [0], [0], [1], [0, 0, 1, 1], [], []>} : vector<16x32xf32>, vector<32x128xf32>, vector<16x128xf32> -> vector<16x128xf32>
    %c0_3 = arith.constant 0 : index
    %c0_4 = arith.constant 0 : index
    %3 = vector.load %arg6[%c0_3, %c0_4] : memref<1x128xf32, #tpu.memory_space<vmem>>, vector<1x128xf32>
    %4 = vector.broadcast %3 : vector<1x128xf32> to vector<16x128xf32>
    %5 = arith.addf %2, %4 : vector<16x128xf32>
    %c0_5 = arith.constant 0 : index
    %c0_6 = arith.constant 0 : index
    %6 = vector.load %arg5[%c0_5, %c0_6] : memref<32x128xf32, #tpu.memory_space<vmem>>, vector<32x128xf32>
    %cst_7 = arith.constant dense<0.000000e+00> : vector<16x128xf32>
    %7 = tpu.matmul %0, %6, %cst_7 {dimension_numbers = #tpu.dot_dimension_numbers<[1], [0], [0], [1], [0, 0, 1, 1], [], []>} : vector<16x32xf32>, vector<32x128xf32>, vector<16x128xf32> -> vector<16x128xf32>
    %c0_8 = arith.constant 0 : index
    %c0_9 = arith.constant 0 : index
    %8 = vector.load %arg7[%c0_8, %c0_9] : memref<1x128xf32, #tpu.memory_space<vmem>>, vector<1x128xf32>
    %9 = vector.broadcast %8 : vector<1x128xf32> to vector<16x128xf32>
    %10 = arith.addf %7, %9 : vector<16x128xf32>
    %cst_10 = arith.constant 5.000000e-01 : f32
    %11 = vector.broadcast %cst_10 : f32 to vector<16x128xf32>
    %12 = arith.mulf %11, %10 : vector<16x128xf32>
    %cst_11 = arith.constant 0.707106769 : f32
    %13 = vector.broadcast %cst_11 : f32 to vector<16x128xf32>
    %14 = arith.mulf %10, %13 : vector<16x128xf32>
    %15 = math.erf %14 : vector<16x128xf32>
    %cst_12 = arith.constant 1.000000e+00 : f32
    %16 = vector.broadcast %cst_12 : f32 to vector<16x128xf32>
    %17 = arith.addf %16, %15 : vector<16x128xf32>
    %18 = arith.mulf %12, %17 : vector<16x128xf32>
    %19 = arith.mulf %5, %18 : vector<16x128xf32>
    %c0_13 = arith.constant 0 : index
    %c0_14 = arith.constant 0 : index
    %20 = vector.load %arg8[%c0_13, %c0_14] : memref<128x32xf32, #tpu.memory_space<vmem>>, vector<128x32xf32>
    %cst_15 = arith.constant dense<0.000000e+00> : vector<16x32xf32>
    %21 = tpu.matmul %19, %20, %cst_15 {dimension_numbers = #tpu.dot_dimension_numbers<[1], [0], [0], [1], [0, 0, 1, 1], [], []>} : vector<16x128xf32>, vector<128x32xf32>, vector<16x32xf32> -> vector<16x32xf32>
    %c0_16 = arith.constant 0 : index
    %c0_17 = arith.constant 0 : index
    %22 = vector.load %arg9[%c0_16, %c0_17] : memref<1x32xf32, #tpu.memory_space<vmem>>, vector<1x32xf32>
    %23 = vector.broadcast %22 : vector<1x32xf32> to vector<16x32xf32>
    %24 = arith.addf %21, %23 : vector<16x32xf32>
    %c0_18 = arith.constant 0 : index
    %c0_19 = arith.constant 0 : index
    %25 = vector.load %arg10[%c0_18, %c0_19] : memref<16x32xf32, #tpu.memory_space<vmem>>, vector<16x32xf32>
    tpu.vector_store %arg10[%c0_18, %c0_19], %24 {strides = array<i32>} : memref<16x32xf32, #tpu.memory_space<vmem>>, vector<16x32xf32>,
    return
  }
  func.func @transform_0(%arg0: i32, %arg1: i32, %arg2: i32) -> (i32, i32) {
    %c0_i32 = arith.constant 0 : i32
    %c0_i32_0 = arith.constant 0 : i32
    return %arg0, %c0_i32 : i32, i32
  }
  func.func @transform_1(%arg0: i32, %arg1: i32, %arg2: i32) -> (i32, i32) {
    %c0_i32 = arith.constant 0 : i32
    %c0_i32_0 = arith.constant 0 : i32
    return %c0_i32, %arg2 : i32, i32
  }
  func.func @transform_2(%arg0: i32, %arg1: i32, %arg2: i32) -> (i32, i32) {
    %c0_i32 = arith.constant 0 : i32
    %c0_i32_0 = arith.constant 0 : i32
    return %c0_i32, %arg2 : i32, i32
  }
  func.func @transform_3(%arg0: i32, %arg1: i32, %arg2: i32) -> (i32, i32) {
    %c0_i32 = arith.constant 0 : i32
    %c0_i32_0 = arith.constant 0 : i32
    return %c0_i32, %arg2 : i32, i32
  }
  func.func @transform_4(%arg0: i32, %arg1: i32, %arg2: i32) -> (i32, i32) {
    %c0_i32 = arith.constant 0 : i32
    %c0_i32_0 = arith.constant 0 : i32
    return %c0_i32, %arg2 : i32, i32
  }
  func.func @transform_5(%arg0: i32, %arg1: i32, %arg2: i32) -> (i32, i32) {
    %c0_i32 = arith.constant 0 : i32
    return %arg2, %arg1 : i32, i32
  }
  func.func @transform_6(%arg0: i32, %arg1: i32, %arg2: i32) -> (i32, i32) {
    %c0_i32 = arith.constant 0 : i32
    %c0_i32_0 = arith.constant 0 : i32
    return %c0_i32, %arg1 : i32, i32
  }
  func.func @transform_7(%arg0: i32, %arg1: i32, %arg2: i32) -> (i32, i32) {
    %c0_i32 = arith.constant 0 : i32
    return %arg0, %arg1 : i32, i32
  }
}

</mosaic_0001>

<llo_original>
// kernel: tpu_custom_call.1
$region0: #{tpu_custom_call.1}
  #allocation0 [shape = 'u32[]', space=smem, size = 0x4, offset = 0x4, fixed_abs, tag = 'smem constant byte address 0x4 - core index']
  #allocation1 [shape = 'u32[144,128]{1,0:T(1,128)}', space=vmem, size = 0x12000, scoped, tag = 'internal scratch']
  %s0 = inlined_call_operand.vmem [shape: f32[16,32], index: 0, kind: input, shape index: {}]
  %s1 = inlined_call_operand.vmem [shape: f32[32,128], index: 1, kind: input, shape index: {}]
  %s2 = inlined_call_operand.vmem [shape: f32[32,128], index: 2, kind: input, shape index: {}]
  %s3 = inlined_call_operand.vmem [shape: f32[1,128], index: 3, kind: input, shape index: {}]
  %s4 = inlined_call_operand.vmem [shape: f32[1,128], index: 4, kind: input, shape index: {}]
  %s5 = inlined_call_operand.vmem [shape: f32[128,32], index: 5, kind: input, shape index: {}]
  %s6 = inlined_call_operand.vmem [shape: f32[1,32], index: 6, kind: input, shape index: {}]
  %s7 = inlined_call_operand.hbm [shape: f32[16,32], index: 7, kind: output, shape index: {}]
  %s8 = sld [smem:[#allocation0]]
  $region38: #{tpu_custom_call.1} parent=0
    _
  %s10 = ssub.s32 1, %s8
  %s11 = scalar_select 0, %s10, %s8
  $region1: #{tpu_custom_call.1} parent=0
    #allocation2 [shape = 'u8[8192]{0}', space=vmem, size = 0x2000, scoped, tag = 'output window, operand 0, single buffered']
    #allocation3 [shape = 's32[1]{0}', space=sflag, size = 0x4, scoped, tag = 'scoped memory for tpu_custom_call.1']
    %12 = vsyncpa [#allocation3], 0
    // Predicated region
    $region2: #{tpu_custom_call.1} parent=1 // pred_check
      _
    $region3: #{tpu_custom_call.1} parent=1 // pred_check_branch
      %14 = sbr.rel (0) target = $region5
    $region4: #{tpu_custom_call.1} parent=1 // pred_region
      _
    $region5: #{tpu_custom_call.1} parent=1 // pred_fallthru
      _
    // Predicated region
    $region6: #{tpu_custom_call.1} parent=1 // pred_check
      _
    $region7: #{tpu_custom_call.1} parent=1 // pred_check_branch
      %16 = sbr.rel (0) target = $region9
    $region8: #{tpu_custom_call.1} parent=1 // pred_region
      _
    $region9: #{tpu_custom_call.1} parent=1 // pred_fallthru
      _
    // Predicated region
    $region10: #{tpu_custom_call.1} parent=1 // pred_check
      _
    $region11: #{tpu_custom_call.1} parent=1 // pred_check_branch
      %18 = sbr.rel (0) target = $region13
    $region12: #{tpu_custom_call.1} parent=1 // pred_region
      _
    $region13: #{tpu_custom_call.1} parent=1 // pred_fallthru
      _
    // Predicated region
    $region14: #{tpu_custom_call.1} parent=1 // pred_check
      _
    $region15: #{tpu_custom_call.1} parent=1 // pred_check_branch
      %20 = sbr.rel (0) target = $region17
    $region16: #{tpu_custom_call.1} parent=1 // pred_region
      _
    $region17: #{tpu_custom_call.1} parent=1 // pred_fallthru
      _
    // Predicated region
    $region18: #{tpu_custom_call.1} parent=1 // pred_check
      _
    $region19: #{tpu_custom_call.1} parent=1 // pred_check_branch
      %22 = sbr.rel (0) target = $region21
    $region20: #{tpu_custom_call.1} parent=1 // pred_region
      _
    $region21: #{tpu_custom_call.1} parent=1 // pred_fallthru
      _
    // Predicated region
    $region22: #{tpu_custom_call.1} parent=1 // pred_check
      _
    $region23: #{tpu_custom_call.1} parent=1 // pred_check_branch
      %24 = sbr.rel (0) target = $region25
    $region24: #{tpu_custom_call.1} parent=1 // pred_region
      _
    $region25: #{tpu_custom_call.1} parent=1 // pred_fallthru
      _
    // Predicated region
    $region26: #{tpu_custom_call.1} parent=1 // pred_check
      _
    $region27: #{tpu_custom_call.1} parent=1 // pred_check_branch
      %26 = sbr.rel (0) target = $region29
    $region28: #{tpu_custom_call.1} parent=1 // pred_region
      _
    $region29: #{tpu_custom_call.1} parent=1 // pred_fallthru
      _
    %v27 = vld [vmem:[%s0] sm:$0xff]
    %v28 = vld [vmem:[%s0 + $0x8] sm:$0xff]
    %v29 = vld [vmem:[%s1] sm:$0xff]
    %v30 = vld [vmem:[%s1 + $0x8] sm:$0xff]
    %v31 = vld [vmem:[%s1 + $0x10] sm:$0xff]
    %v32 = vld [vmem:[%s1 + $0x18] sm:$0xff]
    %v33 = vld [vmem:[%s3] sm:$0x1]
    %v35 = vlaneseq
    %v36 = vshrl.u32 %v35, 7
    %v37 = vsub.s32 0, %v36
    %v38 = vrot.slane %v33, %v37
    %vm40 = vcmask 261120
    %v42 = vsel %vm40, %v27, 0
    %v45 = vsel %vm40, %v28, 0
    %47 = vmatprep.subr.mxu0 0.0
    %48 = vmatpush1.msra.mxu0 %v29
    %49 = vmatprep.subr.mxu0 0.0
    %50 = vmatpush1.msra.mxu0 %v30
    %51 = vmatprep.subr.mxu0 0.0
    %52 = vmatpush1.msra.mxu0 %v31
    %53 = vmatprep.subr.mxu0 0.0
    %54 = vmatpush1.msra.mxu0 %v32
    %55 = vmatprep.subr.mxu0 0.0
    %56 = vmatpush1.msra.mxu0 0.0
    %57 = vmatprep.subr.mxu0 0.0
    %58 = vmatpush1.msra.mxu0 0.0
    %59 = vmatprep.subr.mxu0 0.0
    %60 = vmatpush1.msra.mxu0 0.0
    %61 = vmatprep.subr.mxu0 0.0
    %62 = vmatpush1.msra.mxu0 0.0
    %63 = vmatprep.subr.mxu0 0.0
    %64 = vmatpush1.msra.mxu0 0.0
    %65 = vmatprep.subr.mxu0 0.0
    %66 = vmatpush1.msra.mxu0 0.0
    %67 = vmatprep.subr.mxu0 0.0
    %68 = vmatpush1.msra.mxu0 0.0
    %69 = vmatprep.subr.mxu0 0.0
    %70 = vmatpush1.msra.mxu0 0.0
    %71 = vmatprep.subr.mxu0 0.0
    %72 = vmatpush1.msra.mxu0 0.0
    %73 = vmatprep.subr.mxu0 0.0
    %74 = vmatpush1.msra.mxu0 0.0
    %75 = vmatprep.subr.mxu0 0.0
    %76 = vmatpush1.msra.mxu0 0.0
    %77 = vmatprep.subr.mxu0 0.0
    %78 = vmatpush1.msra.mxu0 0.0
    %79 = vmatprep.subr.mxu0 0.0
    %80 = vmatpush1.msra.mxu0 0.0
    %81 = vmatprep.subr.mxu0 0.0
    %82 = vmatpush1.msra.mxu0 0.0
    %83 = vmatprep.subr.mxu0 0.0
    %84 = vmatpush1.msra.mxu0 0.0
    %85 = vmatprep.subr.mxu0 0.0
    %86 = vmatpush1.msra.mxu0 0.0
    %87 = vmatprep.subr.mxu0 0.0
    %88 = vmatpush1.msra.mxu0 0.0
    %89 = vmatprep.subr.mxu0 0.0
    %90 = vmatpush1.msra.mxu0 0.0
    %91 = vmatprep.subr.mxu0 0.0
    %92 = vmatpush1.msra.mxu0 0.0
    %93 = vmatprep.subr.mxu0 0.0
    %94 = vmatpush1.msra.mxu0 0.0
    %95 = vmatprep.subr.mxu0 0.0
    %96 = vmatpush1.msra.mxu0 0.0
    %97 = vmatprep.subr.mxu0 0.0
    %98 = vmatpush1.msra.mxu0 0.0
    %99 = vmatprep.subr.mxu0 0.0
    %100 = vmatpush1.msra.mxu0 0.0
    %101 = vmatprep.subr.mxu0 0.0
    %102 = vmatpush1.msra.mxu0 0.0
    %103 = vmatprep.subr.mxu0 0.0
    %104 = vmatpush1.msra.mxu0 0.0
    %105 = vmatprep.subr.mxu0 0.0
    %106 = vmatpush1.msra.mxu0 0.0
    %107 = vmatprep.subr.mxu0 0.0
    %108 = vmatpush1.msra.mxu0 0.0
    %109 = vmatprep.subr.mxu0 0.0
    %110 = vmatpush1.msra.mxu0 0.0
    %111 = vmatprep.mubr.f32.mxu0 0.0
    %112 = vmatmul.mubr.f32.gmra.mrb[0].mxu0 %v42
    %v113 = vpop.f32.mrb[0].mxu0
    %v114 = vadd.f32 %v38, %v113
    %v115 = vpop.f32.mrb[0].mxu0
    %116 = vmatprep.mubr.f32.mxu0 0.0
    %117 = vmatmul.mubr.f32.gmra.mrb[0].mxu0 %v45
    %v118 = vpop.f32.mrb[0].mxu0
    %v119 = vadd.f32 %v38, %v118
    %v120 = vpop.f32.mrb[0].mxu0
    %121 = vdwg.mxu0
    %v122 = vld [vmem:[%s2] sm:$0xff]
    %v123 = vld [vmem:[%s2 + $0x8] sm:$0xff]
    %v124 = vld [vmem:[%s2 + $0x10] sm:$0xff]
    %v125 = vld [vmem:[%s2 + $0x18] sm:$0xff]
    %v126 = vld [vmem:[%s4] sm:$0x1]
    %v128 = vlaneseq
    %v129 = vshrl.u32 %v128, 7
    %v130 = vsub.s32 0, %v129
    %v131 = vrot.slane %v126, %v130
    %133 = vmatprep.subr.mxu0 0.0
    %134 = vmatpush1.msra.mxu0 %v122
    %135 = vmatprep.subr.mxu0 0.0
    %136 = vmatpush1.msra.mxu0 %v123
    %137 = vmatprep.subr.mxu0 0.0
    %138 = vmatpush1.msra.mxu0 %v124
    %139 = vmatprep.subr.mxu0 0.0
    %140 = vmatpush1.msra.mxu0 %v125
    %141 = vmatprep.subr.mxu0 0.0
    %142 = vmatpush1.msra.mxu0 0.0
    %143 = vmatprep.subr.mxu0 0.0
    %144 = vmatpush1.msra.mxu0 0.0
    %145 = vmatprep.subr.mxu0 0.0
    %146 = vmatpush1.msra.mxu0 0.0
    %147 = vmatprep.subr.mxu0 0.0
    %148 = vmatpush1.msra.mxu0 0.0
    %149 = vmatprep.subr.mxu0 0.0
    %150 = vmatpush1.msra.mxu0 0.0
    %151 = vmatprep.subr.mxu0 0.0
    %152 = vmatpush1.msra.mxu0 0.0
    %153 = vmatprep.subr.mxu0 0.0
    %154 = vmatpush1.msra.mxu0 0.0
    %155 = vmatprep.subr.mxu0 0.0
    %156 = vmatpush1.msra.mxu0 0.0
    %157 = vmatprep.subr.mxu0 0.0
    %158 = vmatpush1.msra.mxu0 0.0
    %159 = vmatprep.subr.mxu0 0.0
    %160 = vmatpush1.msra.mxu0 0.0
    %161 = vmatprep.subr.mxu0 0.0
    %162 = vmatpush1.msra.mxu0 0.0
    %163 = vmatprep.subr.mxu0 0.0
    %164 = vmatpush1.msra.mxu0 0.0
    %165 = vmatprep.subr.mxu0 0.0
    %166 = vmatpush1.msra.mxu0 0.0
    %167 = vmatprep.subr.mxu0 0.0
    %168 = vmatpush1.msra.mxu0 0.0
    %169 = vmatprep.subr.mxu0 0.0
    %170 = vmatpush1.msra.mxu0 0.0
    %171 = vmatprep.subr.mxu0 0.0
    %172 = vmatpush1.msra.mxu0 0.0
    %173 = vmatprep.subr.mxu0 0.0
    %174 = vmatpush1.msra.mxu0 0.0
    %175 = vmatprep.subr.mxu0 0.0
    %176 = vmatpush1.msra.mxu0 0.0
    %177 = vmatprep.subr.mxu0 0.0
    %178 = vmatpush1.msra.mxu0 0.0
    %179 = vmatprep.subr.mxu0 0.0
    %180 = vmatpush1.msra.mxu0 0.0
    %181 = vmatprep.subr.mxu0 0.0
    %182 = vmatpush1.msra.mxu0 0.0
    %183 = vmatprep.subr.mxu0 0.0
    %184 = vmatpush1.msra.mxu0 0.0
    %185 = vmatprep.subr.mxu0 0.0
    %186 = vmatpush1.msra.mxu0 0.0
    %187 = vmatprep.subr.mxu0 0.0
    %188 = vmatpush1.msra.mxu0 0.0
    %189 = vmatprep.subr.mxu0 0.0
    %190 = vmatpush1.msra.mxu0 0.0
    %191 = vmatprep.subr.mxu0 0.0
    %192 = vmatpush1.msra.mxu0 0.0
    %193 = vmatprep.subr.mxu0 0.0
    %194 = vmatpush1.msra.mxu0 0.0
    %195 = vmatprep.subr.mxu0 0.0
    %196 = vmatpush1.msra.mxu0 0.0
    %197 = vmatprep.mubr.f32.mxu0 0.0
    %198 = vmatmul.mubr.f32.gmra.mrb[0].mxu0 %v42
    %v199 = vpop.f32.mrb[0].mxu0
    %v200 = vadd.f32 %v131, %v199
    %v201 = vpop.f32.mrb[0].mxu0
    %202 = vmatprep.mubr.f32.mxu0 0.0
    %203 = vmatmul.mubr.f32.gmra.mrb[0].mxu0 %v45
    %v204 = vpop.f32.mrb[0].mxu0
    %v205 = vadd.f32 %v131, %v204
    %v206 = vpop.f32.mrb[0].mxu0
    %207 = vdwg.mxu0
    %v208 = vmul.f32 %v200, 0.5
    %v209 = vmul.f32 %v205, 0.5
    %v210 = vmul.f32 %v200, 0.70710677
    %v211 = vmul.f32 %v205, 0.70710677
    %v212 = verf.f32.pop %v210
    %v213 = verf.f32.pop %v211
    %v214 = vadd.f32 %v212, 1.0
    %v215 = vadd.f32 %v213, 1.0
    %v216 = vmul.f32 %v208, %v214
    %v217 = vmul.f32 %v209, %v215
    %v218 = vmul.f32 %v114, %v216
    %v219 = vmul.f32 %v119, %v217
    %v220 = vld [vmem:[%s5] sm:$0xff]
    %v221 = vld [vmem:[%s5 + $0x8] sm:$0xff]
    %v222 = vld [vmem:[%s5 + $0x10] sm:$0xff]
    %v223 = vld [vmem:[%s5 + $0x18] sm:$0xff]
    %v224 = vld [vmem:[%s5 + $0x20] sm:$0xff]
    %v225 = vld [vmem:[%s5 + $0x28] sm:$0xff]
    %v226 = vld [vmem:[%s5 + $0x30] sm:$0xff]
    %v227 = vld [vmem:[%s5 + $0x38] sm:$0xff]
    %v228 = vld [vmem:[%s5 + $0x40] sm:$0xff]
    %v229 = vld [vmem:[%s5 + $0x48] sm:$0xff]
    %v230 = vld [vmem:[%s5 + $0x50] sm:$0xff]
    %v231 = vld [vmem:[%s5 + $0x58] sm:$0xff]
    %v232 = vld [vmem:[%s5 + $0x60] sm:$0xff]
    %v233 = vld [vmem:[%s5 + $0x68] sm:$0xff]
    %v234 = vld [vmem:[%s5 + $0x70] sm:$0xff]
    %v235 = vld [vmem:[%s5 + $0x78] sm:$0xff]
    %v236 = vld [vmem:[%s6] sm:$0x1]
    %v238 = vlaneseq
    %v239 = vshrl.u32 %v238, 7
    %v240 = vsub.s32 0, %v239
    %v241 = vrot.slane %v236, %v240
    %243 = vmatprep.subr.mxu0 0.0
    %244 = vmatpush1.msra.mxu0 %v220
    %245 = vmatprep.subr.mxu0 0.0
    %246 = vmatpush1.msra.mxu0 %v221
    %247 = vmatprep.subr.mxu0 0.0
    %248 = vmatpush1.msra.mxu0 %v222
    %249 = vmatprep.subr.mxu0 0.0
    %250 = vmatpush1.msra.mxu0 %v223
    %251 = vmatprep.subr.mxu0 0.0
    %252 = vmatpush1.msra.mxu0 %v224
    %253 = vmatprep.subr.mxu0 0.0
    %254 = vmatpush1.msra.mxu0 %v225
    %255 = vmatprep.subr.mxu0 0.0
    %256 = vmatpush1.msra.mxu0 %v226
    %257 = vmatprep.subr.mxu0 0.0
    %258 = vmatpush1.msra.mxu0 %v227
    %259 = vmatprep.subr.mxu0 0.0
    %260 = vmatpush1.msra.mxu0 %v228
    %261 = vmatprep.subr.mxu0 0.0
    %262 = vmatpush1.msra.mxu0 %v229
    %263 = vmatprep.subr.mxu0 0.0
    %264 = vmatpush1.msra.mxu0 %v230
    %265 = vmatprep.subr.mxu0 0.0
    %266 = vmatpush1.msra.mxu0 %v231
    %267 = vmatprep.subr.mxu0 0.0
    %268 = vmatpush1.msra.mxu0 %v232
    %269 = vmatprep.subr.mxu0 0.0
    %270 = vmatpush1.msra.mxu0 %v233
    %271 = vmatprep.subr.mxu0 0.0
    %272 = vmatpush1.msra.mxu0 %v234
    %273 = vmatprep.subr.mxu0 0.0
    %274 = vmatpush1.msra.mxu0 %v235
    %275 = vmatprep.subr.mxu0 0.0
    %276 = vmatpush1.msra.mxu0 0.0
    %277 = vmatprep.subr.mxu0 0.0
    %278 = vmatpush1.msra.mxu0 0.0
    %279 = vmatprep.subr.mxu0 0.0
    %280 = vmatpush1.msra.mxu0 0.0
    %281 = vmatprep.subr.mxu0 0.0
    %282 = vmatpush1.msra.mxu0 0.0
    %283 = vmatprep.subr.mxu0 0.0
    %284 = vmatpush1.msra.mxu0 0.0
    %285 = vmatprep.subr.mxu0 0.0
    %286 = vmatpush1.msra.mxu0 0.0
    %287 = vmatprep.subr.mxu0 0.0
    %288 = vmatpush1.msra.mxu0 0.0
    %289 = vmatprep.subr.mxu0 0.0
    %290 = vmatpush1.msra.mxu0 0.0
    %291 = vmatprep.subr.mxu0 0.0
    %292 = vmatpush1.msra.mxu0 0.0
    %293 = vmatprep.subr.mxu0 0.0
    %294 = vmatpush1.msra.mxu0 0.0
    %295 = vmatprep.subr.mxu0 0.0
    %296 = vmatpush1.msra.mxu0 0.0
    %297 = vmatprep.subr.mxu0 0.0
    %298 = vmatpush1.msra.mxu0 0.0
    %299 = vmatprep.subr.mxu0 0.0
    %300 = vmatpush1.msra.mxu0 0.0
    %301 = vmatprep.subr.mxu0 0.0
    %302 = vmatpush1.msra.mxu0 0.0
    %303 = vmatprep.subr.mxu0 0.0
    %304 = vmatpush1.msra.mxu0 0.0
    %305 = vmatprep.subr.mxu0 0.0
    %306 = vmatpush1.msra.mxu0 0.0
    %307 = vmatprep.mubr.f32.mxu0 0.0
    %308 = vmatmul.mubr.f32.gmra.mrb[0].mxu0 %v218
    %v309 = vpop.f32.mrb[0].mxu0
    %v310 = vadd.f32 %v241, %v309
    %v311 = vpop.f32.mrb[0].mxu0
    %312 = vmatprep.mubr.f32.mxu0 0.0
    %313 = vmatmul.mubr.f32.gmra.mrb[0].mxu0 %v219
    %v314 = vpop.f32.mrb[0].mxu0
    %v315 = vadd.f32 %v241, %v314
    %v316 = vpop.f32.mrb[0].mxu0
    %317 = vdwg.mxu0
    %318 = vst.msk [vmem:[#allocation2] sm:$0xff] %vm40, %v310
    %319 = vst.msk [vmem:[#allocation2 + $0x8] sm:$0xff] %vm40, %v315
    // Predicated region
    $region30: #{tpu_custom_call.1} parent=1 // pred_check
      _
    $region31: #{tpu_custom_call.1} parent=1 // pred_check_branch
      %321 = sbr.rel (0) target = $region33
    $region32: #{tpu_custom_call.1} parent=1 // pred_region
      %s323 = ssub.s32 256, 256
      %324 = vsyncadd [#allocation3], %s323
      %s325 = sshll.u32 [#allocation2], 4
      %s326 = int_to_ptr.vmem [resolvable:$true] %s325
      %331 = dma.vmem_to_hbm [thread:$0]  %s326, 256, %s7, [#allocation3], 128, 128, 8
    $region33: #{tpu_custom_call.1} parent=1 // pred_fallthru
      _
    // Predicated region
    $region34: #{tpu_custom_call.1} parent=1 // pred_check
      _
    $region35: #{tpu_custom_call.1} parent=1 // pred_check_branch
      %333 = sbr.rel (0) target = $region37
    $region36: #{tpu_custom_call.1} parent=1 // pred_region
      %334 = dma.done [#allocation3], 256
    $region37: #{tpu_custom_call.1} parent=1 // pred_fallthru
      _
    %335 = vsyncpa [#allocation3], 1

</llo_original>
